<compile_context>
chip_gen: v7x
topology: tpu7x:2x2x1
jax: 0.10.0
libtpu: 0.0.40
codegen_flags: <defaults>
</compile_context>

<pallas_src>
from functools import partial

import jax
import jax.numpy as jnp
from jax import lax
from jax.experimental import pallas as pl
from jax.experimental.pallas import tpu as pltpu


# ---------------------------------------------------------------------------
# Kernel 1: tanh-RNN recurrence over one (batch_block, time_chunk) tile.
# ---------------------------------------------------------------------------
def rnn_recurrence_kernel(xw_ref, h0_ref, whh_ref, bh_ref, y_ref, state_ref,
                          *, seq_len, needs_mask, unroll):
    """Shapes (per block):
      xw_ref:    (T, TB, H)  bf16   precomputed one_hot(x_t) @ W_xh (embedding rows)
      h0_ref:    (1, TB, H)  f32    begin_state
      whh_ref:   (H, H)      bf16   recurrent weight (stored transposed: h @ W_hh)
      bh_ref:    (1, H)      f32    b_ih + b_hh
      y_ref:     (T, TB, H)  bf16   hidden state at every step of this chunk (output)
      state_ref: (1, TB, H)  f32    resident carry across time chunks / final state
    """
    t_chunk = pl.program_id(1)

    # Initialize the recurrent carry from begin_state on the first time chunk
    # of every batch block.
    @pl.when(t_chunk == 0)
    def _():
        state_ref[0] = h0_ref[0]

    whh = whh_ref[...]                                              # bf16, resident
    # Hoist the bias broadcast out of the time loop (JAX does not CSE it).
    bh = jnp.broadcast_to(bh_ref[...], state_ref.shape[1:])        # (TB, H) f32

    T = y_ref.shape[0]
    t_base = t_chunk * T

    def step(t, h):
        # h_t = tanh(x_t @ W_xh + h_{t-1} @ W_hh + b); x_t @ W_xh precomputed.
        # MXU runs in bf16 with f32 accumulation; carry / add / tanh stay f32.
        acc = jnp.dot(h.astype(jnp.bfloat16), whh,
                      preferred_element_type=jnp.float32)
        h_new = jnp.tanh(xw_ref[t].astype(jnp.float32) + acc + bh)
        y_ref[t] = h_new.astype(y_ref.dtype)
        if needs_mask:
            # Padded time steps (seq padded up to a multiple of T) must not
            # advance the carry, so the final state stays exact.
            h_new = jnp.where(t_base + t < seq_len, h_new, h)
        return h_new

    state_ref[0] = lax.fori_loop(0, T, step, state_ref[0], unroll=unroll)


# ---------------------------------------------------------------------------
# Kernel 2: decoder GEMM tiled over (rows = seq*batch, cols = vocab).
# ---------------------------------------------------------------------------
def decoder_kernel(y_ref, w_ref, b_ref, out_ref):
    # y_ref (tm, H) bf16, w_ref (H, tn) bf16, b_ref (1, tn) f32, out (tm, tn) f32.
    out_ref[...] = (
        jnp.dot(y_ref[...], w_ref[...], preferred_element_type=jnp.float32)
        + b_ref[...]
    )


# ---------------------------------------------------------------------------
# Tiling helpers
# ---------------------------------------------------------------------------
def _round_up(n, m):
    return (n + m - 1) // m * m


def _largest_divisor_leq(n, cap):
    for d in range(min(n, cap), 0, -1):
        if n % d == 0:
            return d
    return n


def _pick_tile_with_pad(n, cap, align):
    """Return (tile, padded_n): tile <= cap, multiple of `align` unless it
    covers the whole (possibly sub-`align`) dimension."""
    if n <= cap:
        return n, n
    tile = cap - (cap % align)
    if tile == 0:
        tile = align
    return tile, _round_up(n, tile)


# ---------------------------------------------------------------------------
# Wrapper
# ---------------------------------------------------------------------------
def rnn_model_forward(inputs, state, params, *, vocab_size, num_hiddens,
                      time_chunk=32, batch_block=None,
                      decoder_row_tile=256, decoder_col_tile=2048,
                      vmem_limit_bytes=48 * 1024 * 1024):
    """inputs: (batch, seq) int32 token ids; state: (1, batch, hidden) float32.

    Returns (logits (seq*batch, vocab) f32, final_state (1, batch, hidden) f32),
    matching the PyTorch RNNModel.forward semantics.
    """
    batch, seq = inputs.shape
    H, V = num_hiddens, vocab_size

    # bf16 MXU operands (f32 accumulation happens in the kernels).
    wxh = params["wxh"].astype(jnp.bfloat16)   # (V, H)  == weight_ih_l0.T
    whh = params["whh"].astype(jnp.bfloat16)   # (H, H)  == weight_hh_l0.T
    bh = params["bh"].astype(jnp.float32)      # (1, H)  == bias_ih_l0 + bias_hh_l0
    whq = params["whq"].astype(jnp.bfloat16)   # (H, V)  == linear.weight.T
    bq = params["bq"].astype(jnp.float32)      # (1, V)  == linear.bias

    # one_hot(inputs.T) @ W_xh == row gather from W_xh (embedding lookup), bf16.
    xw = jnp.take(wxh, inputs.T, axis=0)                     # (seq, batch, H) bf16

    # --- time chunking: pad seq to a multiple of T (never degrade to T=1) ----
    T = min(time_chunk, seq)
    seq_p = _round_up(seq, T)
    needs_mask = seq_p != seq
    if needs_mask:
        xw = jnp.pad(xw, ((0, seq_p - seq), (0, 0), (0, 0)))
    nt = seq_p // T

    # --- batch blocking (default: whole batch per block) ---------------------
    TB = batch if batch_block is None else min(batch_block, batch)
    if batch % TB != 0:
        TB = _largest_divisor_leq(batch, TB)
    nb = batch // TB

    recurrence = partial(rnn_recurrence_kernel,
                         seq_len=seq, needs_mask=needs_mask,
                         unroll=min(T, 8))

    # --- recurrent kernel: emits Y (seq_p, batch, H) bf16 + the final state --
    y, final_state = pl.pallas_call(
        recurrence,
        out_shape=(
            jax.ShapeDtypeStruct((seq_p, batch, H), jnp.bfloat16),
            jax.ShapeDtypeStruct((1, batch, H), jnp.float32),
        ),
        grid_spec=pltpu.PrefetchScalarGridSpec(
            num_scalar_prefetch=0,
            grid=(nb, nt),
            in_specs=[
                pl.BlockSpec((T, TB, H), lambda b, t: (t, b, 0)),   # xw chunk
                pl.BlockSpec((1, TB, H), lambda b, t: (0, b, 0)),   # h0
                pl.BlockSpec((H, H), lambda b, t: (0, 0)),          # W_hh (resident)
                pl.BlockSpec((1, H), lambda b, t: (0, 0)),          # b_h  (resident)
            ],
            out_specs=[
                pl.BlockSpec((T, TB, H), lambda b, t: (t, b, 0)),   # Y chunk
                pl.BlockSpec((1, TB, H), lambda b, t: (0, b, 0)),   # state (carry)
            ],
        ),
        compiler_params=pltpu.CompilerParams(
            # batch blocks are independent (megacore-shardable); time is a
            # true recurrence.
            dimension_semantics=("parallel", "arbitrary"),
            vmem_limit_bytes=vmem_limit_bytes,
        ),
    )(xw, state.astype(jnp.float32), whh, bh)

    # --- decoder: lane-dense GEMM tiled over rows AND vocab ------------------
    y = y[:seq]                                              # drop padded time
    M = seq * batch
    y2 = y.reshape(M, H)                                     # bf16

    tm, M_p = _pick_tile_with_pad(M, decoder_row_tile, 8)
    tn, V_p = _pick_tile_with_pad(V, decoder_col_tile, 128)
    if M_p != M:
        y2 = jnp.pad(y2, ((0, M_p - M), (0, 0)))
    whq_p, bq_p = whq, bq
    if V_p != V:
        whq_p = jnp.pad(whq, ((0, 0), (0, V_p - V)))
        bq_p = jnp.pad(bq, ((0, 0), (0, V_p - V)))

    out = pl.pallas_call(
        decoder_kernel,
        out_shape=jax.ShapeDtypeStruct((M_p, V_p), jnp.float32),
        grid_spec=pltpu.PrefetchScalarGridSpec(
            num_scalar_prefetch=0,
            grid=(M_p // tm, V_p // tn),
            in_specs=[
                pl.BlockSpec((tm, H), lambda i, j: (i, 0)),
                pl.BlockSpec((H, tn), lambda i, j: (0, j)),
                pl.BlockSpec((1, tn), lambda i, j: (0, j)),
            ],
            out_specs=pl.BlockSpec((tm, tn), lambda i, j: (i, j)),
        ),
        compiler_params=pltpu.CompilerParams(
            dimension_semantics=("parallel", "parallel"),
            vmem_limit_bytes=vmem_limit_bytes,
        ),
    )(y2, whq_p, bq_p)

    if M_p != M or V_p != V:
        out = out[:M, :V]
    return out, final_state


# ---------------------------------------------------------------------------
# Params / reference / demo
# ---------------------------------------------------------------------------
def make_params(key, vocab_size, num_hiddens):
    """Deterministic init matching PyTorch nn.RNN / nn.Linear (U(-1/sqrt(H), 1/sqrt(H)))."""
    H, V = num_hiddens, vocab_size
    k = 1.0 / jnp.sqrt(jnp.float32(H))
    ks = jax.random.split(key, 6)
    w_ih = jax.random.uniform(ks[0], (H, V), jnp.float32, -k, k)   # weight_ih_l0
    w_hh = jax.random.uniform(ks[1], (H, H), jnp.float32, -k, k)   # weight_hh_l0
    b_ih = jax.random.uniform(ks[2], (H,), jnp.float32, -k, k)
    b_hh = jax.random.uniform(ks[3], (H,), jnp.float32, -k, k)
    w_lin = jax.random.uniform(ks[4], (V, H), jnp.float32, -k, k)  # linear.weight
    b_lin = jax.random.uniform(ks[5], (V,), jnp.float32, -k, k)    # linear.bias
    return {
        "wxh": w_ih.T,                      # (V, H)
        "whh": w_hh.T,                      # (H, H)
        "bh": (b_ih + b_hh)[None, :],       # (1, H)
        "whq": w_lin.T,                     # (H, V)
        "bq": b_lin[None, :],               # (1, V)
    }


def reference_forward(inputs, state, params, *, vocab_size):
    """Pure-JAX f32 reference (lax.scan) mirroring the PyTorch forward (incl. one-hot)."""
    x = jax.nn.one_hot(inputs.T, vocab_size, dtype=jnp.float32)    # (seq, batch, V)
    h0 = state[0]

    def step(h, x_t):
        h_new = jnp.tanh(x_t @ params["wxh"] + h @ params["whh"] + params["bh"])
        return h_new, h_new

    h_last, ys = jax.lax.scan(step, h0, x)                         # ys: (seq, batch, H)
    out = ys.reshape(-1, ys.shape[-1]) @ params["whq"] + params["bq"]
    return out, h_last[None]


if __name__ == "__main__":
    # Small demo shapes; seq=16 with time_chunk=8 exercises the cross-chunk carry.
    batch, seq = 8, 16
    num_hiddens = 32
    vocab_size = 16

    key = jax.random.PRNGKey(0)
    k_tok, k_par = jax.random.split(key)

    inputs = jax.random.randint(k_tok, (batch, seq), 0, vocab_size, dtype=jnp.int32)
    state = jnp.zeros((1, batch, num_hiddens), jnp.float32)        # begin_state
    params = make_params(k_par, vocab_size, num_hiddens)

    out, final_state = rnn_model_forward(
        inputs, state, params,
        vocab_size=vocab_size, num_hiddens=num_hiddens, time_chunk=8,
    )
    jax.block_until_ready((out, final_state))

    # Sanity check against the pure-JAX f32 reference.  The kernel uses bf16
    # MXU operands (carry/bias/tanh in f32), so the tolerance is loosened.
    ref_out, ref_state = reference_forward(inputs, state, params, vocab_size=vocab_size)
    assert out.shape == (seq * batch, vocab_size)
    assert final_state.shape == (1, batch, num_hiddens)
    assert jnp.allclose(out, ref_out, atol=3e-2, rtol=3e-2)
    assert jnp.allclose(final_state, ref_state, atol=2e-2, rtol=2e-2)

    print("KERNEL_OK")
</pallas_src>

<mosaic_0001>
module attributes {stable_mosaic.version = 11 : i64} {
  func.func @rnn_recurrence_kernel(%arg0: i32, %arg1: i32, %arg2: memref<8x8x32xbf16, #tpu.memory_space<vmem>>, %arg3: memref<1x8x32xf32, #tpu.memory_space<vmem>>, %arg4: memref<32x32xbf16, #tpu.memory_space<vmem>>, %arg5: memref<1x32xf32, #tpu.memory_space<vmem>>, %arg6: memref<8x8x32xbf16, #tpu.memory_space<vmem>>, %arg7: memref<1x8x32xf32, #tpu.memory_space<vmem>>) attributes {dimension_semantics = [#tpu.dimension_semantics<parallel>, #tpu.dimension_semantics<arbitrary>], iteration_bounds = array<i64: 1, 2>, scalar_prefetch = 0 : i64, scratch_operands = 0 : i64, tpu.core_type = #tpu.core_type<tc>, window_params = [{transform_indices = @transform_0, window_bounds = array<i64: 8, 8, 32>}, {transform_indices = @transform_1, window_bounds = array<i64: 1, 8, 32>}, {pipeline_mode = #tpu.pipeline_mode<synchronous>, transform_indices = @transform_2, window_bounds = array<i64: 32, 32>}, {pipeline_mode = #tpu.pipeline_mode<synchronous>, transform_indices = @transform_3, window_bounds = array<i64: 1, 32>}, {transform_indices = @transform_4, window_bounds = array<i64: 8, 8, 32>}, {transform_indices = @transform_5, window_bounds = array<i64: 1, 8, 32>}]} {
    %c0_i32 = arith.constant 0 : i32
    %0 = arith.cmpi eq, %arg1, %c0_i32 : i32
    %1 = arith.extui %0 : i1 to i32
    %c0_i32_0 = arith.constant 0 : i32
    %2 = arith.cmpi ne, %1, %c0_i32_0 : i32
    scf.if %2 {
      %c0_50 = arith.constant 0 : index
      %c0_51 = arith.constant 0 : index
      %c0_52 = arith.constant 0 : index
      %124 = vector.load %arg3[%c0_50, %c0_51, %c0_52] : memref<1x8x32xf32, #tpu.memory_space<vmem>>, vector<1x8x32xf32>
      %125 = vector.shape_cast %124 : vector<1x8x32xf32> to vector<8x32xf32>
      %c0_53 = arith.constant 0 : index
      %c0_54 = arith.constant 0 : index
      %c0_55 = arith.constant 0 : index
      %126 = vector.load %arg7[%c0_53, %c0_54, %c0_55] : memref<1x8x32xf32, #tpu.memory_space<vmem>>, vector<1x8x32xf32>
      %127 = vector.shape_cast %126 : vector<1x8x32xf32> to vector<8x32xf32>
      %128 = vector.shape_cast %125 : vector<8x32xf32> to vector<1x8x32xf32>
      tpu.vector_store %arg7[%c0_53, %c0_54, %c0_55], %128 {strides = array<i32>} : memref<1x8x32xf32, #tpu.memory_space<vmem>>, vector<1x8x32xf32>,
    } else {
    }
    %c0 = arith.constant 0 : index
    %c0_1 = arith.constant 0 : index
    %3 = vector.load %arg4[%c0, %c0_1] : memref<32x32xbf16, #tpu.memory_space<vmem>>, vector<32x32xbf16>
    %c0_2 = arith.constant 0 : index
    %c0_3 = arith.constant 0 : index
    %4 = vector.load %arg5[%c0_2, %c0_3] : memref<1x32xf32, #tpu.memory_space<vmem>>, vector<1x32xf32>
    %5 = vector.shape_cast %4 : vector<1x32xf32> to vector<1x32xf32>
    %6 = vector.broadcast %5 : vector<1x32xf32> to vector<8x32xf32>
    %c0_4 = arith.constant 0 : index
    %c0_5 = arith.constant 0 : index
    %c0_6 = arith.constant 0 : index
    %7 = vector.load %arg7[%c0_4, %c0_5, %c0_6] : memref<1x8x32xf32, #tpu.memory_space<vmem>>, vector<1x8x32xf32>
    %8 = vector.shape_cast %7 : vector<1x8x32xf32> to vector<8x32xf32>
    %c0_i32_7 = arith.constant 0 : i32
    %9 = arith.truncf %8 : vector<8x32xf32> to vector<8x32xbf16>
    %cst = arith.constant dense<0.000000e+00> : vector<8x32xf32>
    %10 = tpu.matmul %9, %3, %cst {dimension_numbers = #tpu.dot_dimension_numbers<[1], [0], [0], [1], [0, 0, 1, 1], [], []>} : vector<8x32xbf16>, vector<32x32xbf16>, vector<8x32xf32> -> vector<8x32xf32>
    %11 = arith.index_cast %c0_i32_7 : i32 to index
    %c0_8 = arith.constant 0 : index
    %c0_9 = arith.constant 0 : index
    %12 = vector.load %arg2[%11, %c0_8, %c0_9] : memref<8x8x32xbf16, #tpu.memory_space<vmem>>, vector<1x8x32xbf16>
    %13 = vector.shape_cast %12 : vector<1x8x32xbf16> to vector<8x32xbf16>
    %14 = arith.extf %13 : vector<8x32xbf16> to vector<8x32xf32>
    %15 = arith.addf %14, %10 : vector<8x32xf32>
    %16 = arith.addf %15, %6 : vector<8x32xf32>
    %17 = math.tanh %16 : vector<8x32xf32>
    %18 = arith.truncf %17 : vector<8x32xf32> to vector<8x32xbf16>
    %19 = arith.index_cast %c0_i32_7 : i32 to index
    %c0_10 = arith.constant 0 : index
    %c0_11 = arith.constant 0 : index
    %20 = vector.load %arg6[%19, %c0_10, %c0_11] : memref<8x8x32xbf16, #tpu.memory_space<vmem>>, vector<1x8x32xbf16>
    %21 = vector.shape_cast %20 : vector<1x8x32xbf16> to vector<8x32xbf16>
    %22 = vector.shape_cast %18 : vector<8x32xbf16> to vector<1x8x32xbf16>
    tpu.vector_store %arg6[%19, %c0_10, %c0_11], %22 {strides = array<i32>} : memref<8x8x32xbf16, #tpu.memory_space<vmem>>, vector<1x8x32xbf16>,
    %c1_i32 = arith.constant 1 : i32
    %23 = arith.truncf %17 : vector<8x32xf32> to vector<8x32xbf16>
    %cst_12 = arith.constant dense<0.000000e+00> : vector<8x32xf32>
    %24 = tpu.matmul %23, %3, %cst_12 {dimension_numbers = #tpu.dot_dimension_numbers<[1], [0], [0], [1], [0, 0, 1, 1], [], []>} : vector<8x32xbf16>, vector<32x32xbf16>, vector<8x32xf32> -> vector<8x32xf32>
    %25 = arith.index_cast %c1_i32 : i32 to index
    %c0_13 = arith.constant 0 : index
    %c0_14 = arith.constant 0 : index
    %26 = vector.load %arg2[%25, %c0_13, %c0_14] : memref<8x8x32xbf16, #tpu.memory_space<vmem>>, vector<1x8x32xbf16>
    %27 = vector.shape_cast %26 : vector<1x8x32xbf16> to vector<8x32xbf16>
    %28 = arith.extf %27 : vector<8x32xbf16> to vector<8x32xf32>
    %29 = arith.addf %28, %24 : vector<8x32xf32>
    %30 = arith.addf %29, %6 : vector<8x32xf32>
    %31 = math.tanh %30 : vector<8x32xf32>
    %32 = arith.truncf %31 : vector<8x32xf32> to vector<8x32xbf16>
    %33 = arith.index_cast %c1_i32 : i32 to index
    %c0_15 = arith.constant 0 : index
    %c0_16 = arith.constant 0 : index
    %34 = vector.load %arg6[%33, %c0_15, %c0_16] : memref<8x8x32xbf16, #tpu.memory_space<vmem>>, vector<1x8x32xbf16>
    %35 = vector.shape_cast %34 : vector<1x8x32xbf16> to vector<8x32xbf16>
    %36 = vector.shape_cast %32 : vector<8x32xbf16> to vector<1x8x32xbf16>
    tpu.vector_store %arg6[%33, %c0_15, %c0_16], %36 {strides = array<i32>} : memref<8x8x32xbf16, #tpu.memory_space<vmem>>, vector<1x8x32xbf16>,
    %c2_i32 = arith.constant 2 : i32
    %37 = arith.truncf %31 : vector<8x32xf32> to vector<8x32xbf16>
    %cst_17 = arith.constant dense<0.000000e+00> : vector<8x32xf32>
    %38 = tpu.matmul %37, %3, %cst_17 {dimension_numbers = #tpu.dot_dimension_numbers<[1], [0], [0], [1], [0, 0, 1, 1], [], []>} : vector<8x32xbf16>, vector<32x32xbf16>, vector<8x32xf32> -> vector<8x32xf32>
    %39 = arith.index_cast %c2_i32 : i32 to index
    %c0_18 = arith.constant 0 : index
    %c0_19 = arith.constant 0 : index
    %40 = vector.load %arg2[%39, %c0_18, %c0_19] : memref<8x8x32xbf16, #tpu.memory_space<vmem>>, vector<1x8x32xbf16>
    %41 = vector.shape_cast %40 : vector<1x8x32xbf16> to vector<8x32xbf16>
    %42 = arith.extf %41 : vector<8x32xbf16> to vector<8x32xf32>
    %43 = arith.addf %42, %38 : vector<8x32xf32>
    %44 = arith.addf %43, %6 : vector<8x32xf32>
    %45 = math.tanh %44 : vector<8x32xf32>
    %46 = arith.truncf %45 : vector<8x32xf32> to vector<8x32xbf16>
    %47 = arith.index_cast %c2_i32 : i32 to index
    %c0_20 = arith.constant 0 : index
    %c0_21 = arith.constant 0 : index
    %48 = vector.load %arg6[%47, %c0_20, %c0_21] : memref<8x8x32xbf16, #tpu.memory_space<vmem>>, vector<1x8x32xbf16>
    %49 = vector.shape_cast %48 : vector<1x8x32xbf16> to vector<8x32xbf16>
    %50 = vector.shape_cast %46 : vector<8x32xbf16> to vector<1x8x32xbf16>
    tpu.vector_store %arg6[%47, %c0_20, %c0_21], %50 {strides = array<i32>} : memref<8x8x32xbf16, #tpu.memory_space<vmem>>, vector<1x8x32xbf16>,
    %c3_i32 = arith.constant 3 : i32
    %51 = arith.truncf %45 : vector<8x32xf32> to vector<8x32xbf16>
    %cst_22 = arith.constant dense<0.000000e+00> : vector<8x32xf32>
    %52 = tpu.matmul %51, %3, %cst_22 {dimension_numbers = #tpu.dot_dimension_numbers<[1], [0], [0], [1], [0, 0, 1, 1], [], []>} : vector<8x32xbf16>, vector<32x32xbf16>, vector<8x32xf32> -> vector<8x32xf32>
    %53 = arith.index_cast %c3_i32 : i32 to index
    %c0_23 = arith.constant 0 : index
    %c0_24 = arith.constant 0 : index
    %54 = vector.load %arg2[%53, %c0_23, %c0_24] : memref<8x8x32xbf16, #tpu.memory_space<vmem>>, vector<1x8x32xbf16>
    %55 = vector.shape_cast %54 : vector<1x8x32xbf16> to vector<8x32xbf16>
    %56 = arith.extf %55 : vector<8x32xbf16> to vector<8x32xf32>
    %57 = arith.addf %56, %52 : vector<8x32xf32>
    %58 = arith.addf %57, %6 : vector<8x32xf32>
    %59 = math.tanh %58 : vector<8x32xf32>
    %60 = arith.truncf %59 : vector<8x32xf32> to vector<8x32xbf16>
    %61 = arith.index_cast %c3_i32 : i32 to index
    %c0_25 = arith.constant 0 : index
    %c0_26 = arith.constant 0 : index
    %62 = vector.load %arg6[%61, %c0_25, %c0_26] : memref<8x8x32xbf16, #tpu.memory_space<vmem>>, vector<1x8x32xbf16>
    %63 = vector.shape_cast %62 : vector<1x8x32xbf16> to vector<8x32xbf16>
    %64 = vector.shape_cast %60 : vector<8x32xbf16> to vector<1x8x32xbf16>
    tpu.vector_store %arg6[%61, %c0_25, %c0_26], %64 {strides = array<i32>} : memref<8x8x32xbf16, #tpu.memory_space<vmem>>, vector<1x8x32xbf16>,
    %c4_i32 = arith.constant 4 : i32
    %65 = arith.truncf %59 : vector<8x32xf32> to vector<8x32xbf16>
    %cst_27 = arith.constant dense<0.000000e+00> : vector<8x32xf32>
    %66 = tpu.matmul %65, %3, %cst_27 {dimension_numbers = #tpu.dot_dimension_numbers<[1], [0], [0], [1], [0, 0, 1, 1], [], []>} : vector<8x32xbf16>, vector<32x32xbf16>, vector<8x32xf32> -> vector<8x32xf32>
    %67 = arith.index_cast %c4_i32 : i32 to index
    %c0_28 = arith.constant 0 : index
    %c0_29 = arith.constant 0 : index
    %68 = vector.load %arg2[%67, %c0_28, %c0_29] : memref<8x8x32xbf16, #tpu.memory_space<vmem>>, vector<1x8x32xbf16>
    %69 = vector.shape_cast %68 : vector<1x8x32xbf16> to vector<8x32xbf16>
    %70 = arith.extf %69 : vector<8x32xbf16> to vector<8x32xf32>
    %71 = arith.addf %70, %66 : vector<8x32xf32>
    %72 = arith.addf %71, %6 : vector<8x32xf32>
    %73 = math.tanh %72 : vector<8x32xf32>
    %74 = arith.truncf %73 : vector<8x32xf32> to vector<8x32xbf16>
    %75 = arith.index_cast %c4_i32 : i32 to index
    %c0_30 = arith.constant 0 : index
    %c0_31 = arith.constant 0 : index
    %76 = vector.load %arg6[%75, %c0_30, %c0_31] : memref<8x8x32xbf16, #tpu.memory_space<vmem>>, vector<1x8x32xbf16>
    %77 = vector.shape_cast %76 : vector<1x8x32xbf16> to vector<8x32xbf16>
    %78 = vector.shape_cast %74 : vector<8x32xbf16> to vector<1x8x32xbf16>
    tpu.vector_store %arg6[%75, %c0_30, %c0_31], %78 {strides = array<i32>} : memref<8x8x32xbf16, #tpu.memory_space<vmem>>, vector<1x8x32xbf16>,
    %c5_i32 = arith.constant 5 : i32
    %79 = arith.truncf %73 : vector<8x32xf32> to vector<8x32xbf16>
    %cst_32 = arith.constant dense<0.000000e+00> : vector<8x32xf32>
    %80 = tpu.matmul %79, %3, %cst_32 {dimension_numbers = #tpu.dot_dimension_numbers<[1], [0], [0], [1], [0, 0, 1, 1], [], []>} : vector<8x32xbf16>, vector<32x32xbf16>, vector<8x32xf32> -> vector<8x32xf32>
    %81 = arith.index_cast %c5_i32 : i32 to index
    %c0_33 = arith.constant 0 : index
    %c0_34 = arith.constant 0 : index
    %82 = vector.load %arg2[%81, %c0_33, %c0_34] : memref<8x8x32xbf16, #tpu.memory_space<vmem>>, vector<1x8x32xbf16>
    %83 = vector.shape_cast %82 : vector<1x8x32xbf16> to vector<8x32xbf16>
    %84 = arith.extf %83 : vector<8x32xbf16> to vector<8x32xf32>
    %85 = arith.addf %84, %80 : vector<8x32xf32>
    %86 = arith.addf %85, %6 : vector<8x32xf32>
    %87 = math.tanh %86 : vector<8x32xf32>
    %88 = arith.truncf %87 : vector<8x32xf32> to vector<8x32xbf16>
    %89 = arith.index_cast %c5_i32 : i32 to index
    %c0_35 = arith.constant 0 : index
    %c0_36 = arith.constant 0 : index
    %90 = vector.load %arg6[%89, %c0_35, %c0_36] : memref<8x8x32xbf16, #tpu.memory_space<vmem>>, vector<1x8x32xbf16>
    %91 = vector.shape_cast %90 : vector<1x8x32xbf16> to vector<8x32xbf16>
    %92 = vector.shape_cast %88 : vector<8x32xbf16> to vector<1x8x32xbf16>
    tpu.vector_store %arg6[%89, %c0_35, %c0_36], %92 {strides = array<i32>} : memref<8x8x32xbf16, #tpu.memory_space<vmem>>, vector<1x8x32xbf16>,
    %c6_i32 = arith.constant 6 : i32
    %93 = arith.truncf %87 : vector<8x32xf32> to vector<8x32xbf16>
    %cst_37 = arith.constant dense<0.000000e+00> : vector<8x32xf32>
    %94 = tpu.matmul %93, %3, %cst_37 {dimension_numbers = #tpu.dot_dimension_numbers<[1], [0], [0], [1], [0, 0, 1, 1], [], []>} : vector<8x32xbf16>, vector<32x32xbf16>, vector<8x32xf32> -> vector<8x32xf32>
    %95 = arith.index_cast %c6_i32 : i32 to index
    %c0_38 = arith.constant 0 : index
    %c0_39 = arith.constant 0 : index
    %96 = vector.load %arg2[%95, %c0_38, %c0_39] : memref<8x8x32xbf16, #tpu.memory_space<vmem>>, vector<1x8x32xbf16>
    %97 = vector.shape_cast %96 : vector<1x8x32xbf16> to vector<8x32xbf16>
    %98 = arith.extf %97 : vector<8x32xbf16> to vector<8x32xf32>
    %99 = arith.addf %98, %94 : vector<8x32xf32>
    %100 = arith.addf %99, %6 : vector<8x32xf32>
    %101 = math.tanh %100 : vector<8x32xf32>
    %102 = arith.truncf %101 : vector<8x32xf32> to vector<8x32xbf16>
    %103 = arith.index_cast %c6_i32 : i32 to index
    %c0_40 = arith.constant 0 : index
    %c0_41 = arith.constant 0 : index
    %104 = vector.load %arg6[%103, %c0_40, %c0_41] : memref<8x8x32xbf16, #tpu.memory_space<vmem>>, vector<1x8x32xbf16>
    %105 = vector.shape_cast %104 : vector<1x8x32xbf16> to vector<8x32xbf16>
    %106 = vector.shape_cast %102 : vector<8x32xbf16> to vector<1x8x32xbf16>
    tpu.vector_store %arg6[%103, %c0_40, %c0_41], %106 {strides = array<i32>} : memref<8x8x32xbf16, #tpu.memory_space<vmem>>, vector<1x8x32xbf16>,
    %c7_i32 = arith.constant 7 : i32
    %107 = arith.truncf %101 : vector<8x32xf32> to vector<8x32xbf16>
    %cst_42 = arith.constant dense<0.000000e+00> : vector<8x32xf32>
    %108 = tpu.matmul %107, %3, %cst_42 {dimension_numbers = #tpu.dot_dimension_numbers<[1], [0], [0], [1], [0, 0, 1, 1], [], []>} : vector<8x32xbf16>, vector<32x32xbf16>, vector<8x32xf32> -> vector<8x32xf32>
    %109 = arith.index_cast %c7_i32 : i32 to index
    %c0_43 = arith.constant 0 : index
    %c0_44 = arith.constant 0 : index
    %110 = vector.load %arg2[%109, %c0_43, %c0_44] : memref<8x8x32xbf16, #tpu.memory_space<vmem>>, vector<1x8x32xbf16>
    %111 = vector.shape_cast %110 : vector<1x8x32xbf16> to vector<8x32xbf16>
    %112 = arith.extf %111 : vector<8x32xbf16> to vector<8x32xf32>
    %113 = arith.addf %112, %108 : vector<8x32xf32>
    %114 = arith.addf %113, %6 : vector<8x32xf32>
    %115 = math.tanh %114 : vector<8x32xf32>
    %116 = arith.truncf %115 : vector<8x32xf32> to vector<8x32xbf16>
    %117 = arith.index_cast %c7_i32 : i32 to index
    %c0_45 = arith.constant 0 : index
    %c0_46 = arith.constant 0 : index
    %118 = vector.load %arg6[%117, %c0_45, %c0_46] : memref<8x8x32xbf16, #tpu.memory_space<vmem>>, vector<1x8x32xbf16>
    %119 = vector.shape_cast %118 : vector<1x8x32xbf16> to vector<8x32xbf16>
    %120 = vector.shape_cast %116 : vector<8x32xbf16> to vector<1x8x32xbf16>
    tpu.vector_store %arg6[%117, %c0_45, %c0_46], %120 {strides = array<i32>} : memref<8x8x32xbf16, #tpu.memory_space<vmem>>, vector<1x8x32xbf16>,
    %c8_i32 = arith.constant 8 : i32
    %c0_47 = arith.constant 0 : index
    %c0_48 = arith.constant 0 : index
    %c0_49 = arith.constant 0 : index
    %121 = vector.load %arg7[%c0_47, %c0_48, %c0_49] : memref<1x8x32xf32, #tpu.memory_space<vmem>>, vector<1x8x32xf32>
    %122 = vector.shape_cast %121 : vector<1x8x32xf32> to vector<8x32xf32>
    %123 = vector.shape_cast %115 : vector<8x32xf32> to vector<1x8x32xf32>
    tpu.vector_store %arg7[%c0_47, %c0_48, %c0_49], %123 {strides = array<i32>} : memref<1x8x32xf32, #tpu.memory_space<vmem>>, vector<1x8x32xf32>,
    return
  }
  func.func @transform_0(%arg0: i32, %arg1: i32) -> (i32, i32, i32) {
    %c0_i32 = arith.constant 0 : i32
    %c0_i32_0 = arith.constant 0 : i32
    return %arg1, %arg0, %c0_i32 : i32, i32, i32
  }
  func.func @transform_1(%arg0: i32, %arg1: i32) -> (i32, i32, i32) {
    %c0_i32 = arith.constant 0 : i32
    %c0_i32_0 = arith.constant 0 : i32
    %c0_i32_1 = arith.constant 0 : i32
    return %c0_i32, %arg0, %c0_i32_0 : i32, i32, i32
  }
  func.func @transform_2(%arg0: i32, %arg1: i32) -> (i32, i32) {
    %c0_i32 = arith.constant 0 : i32
    %c0_i32_0 = arith.constant 0 : i32
    %c0_i32_1 = arith.constant 0 : i32
    return %c0_i32, %c0_i32_0 : i32, i32
  }
  func.func @transform_3(%arg0: i32, %arg1: i32) -> (i32, i32) {
    %c0_i32 = arith.constant 0 : i32
    %c0_i32_0 = arith.constant 0 : i32
    %c0_i32_1 = arith.constant 0 : i32
    return %c0_i32, %c0_i32_0 : i32, i32
  }
  func.func @transform_4(%arg0: i32, %arg1: i32) -> (i32, i32, i32) {
    %c0_i32 = arith.constant 0 : i32
    %c0_i32_0 = arith.constant 0 : i32
    return %arg1, %arg0, %c0_i32 : i32, i32, i32
  }
  func.func @transform_5(%arg0: i32, %arg1: i32) -> (i32, i32, i32) {
    %c0_i32 = arith.constant 0 : i32
    %c0_i32_0 = arith.constant 0 : i32
    %c0_i32_1 = arith.constant 0 : i32
    return %c0_i32, %arg0, %c0_i32_0 : i32, i32, i32
  }
}

</mosaic_0001>

<llo_original>
// kernel: tpu_custom_call.1
$region0: #{tpu_custom_call.1}
  #allocation0 [shape = 'u32[]', space=smem, size = 0x4, offset = 0x4, fixed_abs, tag = 'smem constant byte address 0x4 - core index']
  #allocation1 [shape = 'u32[144,128]{1,0:T(1,128)}', space=vmem, size = 0x12000, scoped, tag = 'internal scratch']
  %s0 = inlined_call_operand.hbm [shape: bf16[16,8,32], index: 0, kind: input, shape index: {}]
  %s1 = inlined_call_operand.hbm [shape: f32[1,8,32], index: 1, kind: input, shape index: {}]
  %s2 = inlined_call_operand.hbm [shape: bf16[32,32], index: 2, kind: input, shape index: {}]
  %s3 = inlined_call_operand.vmem [shape: f32[1,32], index: 3, kind: input, shape index: {}]
  %s4 = inlined_call_operand.hbm [shape: bf16[16,8,32], index: 4, kind: output, shape index: {0}]
  %s5 = inlined_call_operand.hbm [shape: f32[1,8,32], index: 5, kind: output, shape index: {1}]
  %6 = xla_tuple %s4, %s5
  %s7 = sld [smem:[#allocation0]]
  $region73: #{tpu_custom_call.1} parent=0
    _
  %s9 = ssub.s32 1, %s7
  %s10 = scalar_select 0, %s9, %s7
  $region1: #{tpu_custom_call.1} parent=0
    #allocation2 [shape = 'u8[32768]{0}', space=vmem, size = 0x8000, scoped, tag = 'input window, operand 0']
    #allocation3 [shape = 's32[2]{0}', space=sflag, size = 0x8, scoped, tag = 'scoped memory for tpu_custom_call.1']
    #allocation4 [shape = 's32[2]{0}', space=sflag, size = 0x8, scoped, tag = 'scoped memory for tpu_custom_call.1']
    #allocation5 [shape = 'u8[4096]{0}', space=vmem, size = 0x1000, scoped, tag = 'input window, operand 1, single buffered']
    #allocation6 [shape = 's32[1]{0}', space=sflag, size = 0x4, scoped, tag = 'scoped memory for tpu_custom_call.1']
    #allocation7 [shape = 'u8[8192]{0}', space=vmem, size = 0x2000, scoped, tag = 'input window, operand 2, single buffered']
    #allocation8 [shape = 'u8[32768]{0}', space=vmem, size = 0x8000, scoped, tag = 'output window, operand 0']
    #allocation9 [shape = 'u8[4096]{0}', space=vmem, size = 0x1000, scoped, tag = 'output window, operand 1, single buffered']
    #allocation10 [shape = 's32[1]{0}', space=sflag, size = 0x4, scoped, tag = 'scoped memory for tpu_custom_call.1']
    %11 = vsyncpa [#allocation3], 0
    %s12 = scalar_lea.sflag [#allocation3], 1
    %13 = vsyncpa %s12, 0
    %14 = vsyncpa [#allocation6], 0
    %15 = vsyncpa [#allocation4], 0
    %s16 = scalar_lea.sflag [#allocation4], 1
    %17 = vsyncpa %s16, 0
    %18 = vsyncpa [#allocation10], 0
    loop: start=0, step=1, limit=4
    $region2: #{tpu_custom_call.1} parent=1 // loop_pre_header
      _
    $region3: #{tpu_custom_call.1} parent=1 // loop_header
      %s20 = sphi 0, %s24
      %p21 = scmp.ge.s32.totalorder %s20, 4
      %s27 = sphi 0, %s39
      %s28 = sphi 0, %s35
      %s29 = sphi 0, %s27
      %s30 = sphi 0, %s28
      %s31 = sphi 0, %s29
      %s32 = sphi 0, %s30
      %s44 = sphi 0, %s46
      %s47 = sphi 0, %s44
      %s48 = sphi 0, %s47
      %s64 = sphi 0, %s48
      %s70 = sphi 0, %s72
      %s73 = sphi 0, %s70
      %s74 = sphi 0, %s73
      %s90 = sphi 0, %s74
      %s94 = sphi 0, %s94
      %s96 = sphi 0, %s94
      %s97 = sphi 0, %s96
      %s111 = sphi 0, %s97
      %s115 = sphi 0, %s115
      %s117 = sphi 0, %s115
      %s118 = sphi 0, %s117
      %s132 = sphi 0, %s118
      %s140 = sphi 0, %s142
      %s143 = sphi 0, %s140
      %s144 = sphi 0, %s143
      %s160 = sphi 0, %s144
      %s166 = sphi 0, %s168
      %s169 = sphi 0, %s166
      %s170 = sphi 0, %s169
      %s186 = sphi 0, %s170
    $region4: #{tpu_custom_call.1} parent=1 // loop_header_branch
      %23 = sbr.rel (%p21) target = $region8
    $region5: #{tpu_custom_call.1} parent=1 // loop_body
      %s25 = ssub.s32 %s20, 1
      %s26 = ssub.s32 %s20, 2
      %s33 = sadd.s32 1, %s28
      %p34 = scmp.ge.s32.totalorder %s33, 2
      %s35 = scalar_select %p34, 0, %s33
      %s36 = sadd.s32 1, %s27
      %s37 = scalar_select %p34, %s36, %s27
      %p38 = scmp.ge.s32.totalorder %s37, 1
      %s39 = scalar_select %p38, 0, %s37
      %s40 = ssub.s32 %s28, %s35
      %s41 = ssub.s32 %s27, %s39
      %s42 = sor.u32 %s40, %s41
      %p43 = scmp.eq.s32.totalorder %s42, 0
      %s45 = sadd.s32 %s44, 1
      %s46 = scalar_select %p43, %s44, %s45
      %p49 = pneg %p43
      %p50 = scmp.eq.s32.totalorder %s20, 1
      %p51 = por %p49, %p50
      %p52 = scmp.ne.s32.totalorder %s44, %s47
      %p53 = scmp.eq.s32.totalorder %s20, 0
      %p54 = por %p52, %p53
      %p55 = scmp.ne.s32.totalorder %s44, %s47
      %p56 = scmp.eq.s32.totalorder %s25, 1
      %p57 = por %p55, %p56
      %p58 = scmp.ne.s32.totalorder %s47, %s48
      %p59 = scmp.eq.s32.totalorder %s25, 0
      %p60 = por %p58, %p59
      %p61 = scmp.ne.s32.totalorder %s47, %s48
      %p62 = scmp.eq.s32.totalorder %s26, 1
      %p63 = por %p61, %p62
      %p65 = scmp.ne.s32.totalorder %s48, %s64
      %p66 = scmp.eq.s32.totalorder %s26, 0
      %p67 = por %p65, %p66
      %s68 = ssub.s32 %s27, %s39
      %p69 = scmp.eq.s32.totalorder %s68, 0
      %s71 = sadd.s32 %s70, 1
      %s72 = scalar_select %p69, %s70, %s71
      %p75 = pneg %p69
      %p76 = scmp.eq.s32.totalorder %s20, 1
      %p77 = por %p75, %p76
      %p78 = scmp.ne.s32.totalorder %s70, %s73
      %p79 = scmp.eq.s32.totalorder %s20, 0
      %p80 = por %p78, %p79
      %p81 = scmp.ne.s32.totalorder %s70, %s73
      %p82 = scmp.eq.s32.totalorder %s25, 1
      %p83 = por %p81, %p82
      %p84 = scmp.ne.s32.totalorder %s73, %s74
      %p85 = scmp.eq.s32.totalorder %s25, 0
      %p86 = por %p84, %p85
      %p87 = scmp.ne.s32.totalorder %s73, %s74
      %p88 = scmp.eq.s32.totalorder %s26, 1
      %p89 = por %p87, %p88
      %p91 = scmp.ne.s32.totalorder %s74, %s90
      %p92 = scmp.eq.s32.totalorder %s26, 0
      %p93 = por %p91, %p92
      %s95 = sadd.s32 %s94, 1
      %p98 = scmp.eq.s32.totalorder %s20, 1
      %p99 = scmp.ne.s32.totalorder %s94, %s96
      %p100 = scmp.eq.s32.totalorder %s20, 0
      %p101 = por %p99, %p100
      %p102 = scmp.ne.s32.totalorder %s94, %s96
      %p103 = scmp.eq.s32.totalorder %s25, 1
      %p104 = por %p102, %p103
      %p105 = scmp.ne.s32.totalorder %s96, %s97
      %p106 = scmp.eq.s32.totalorder %s25, 0
      %p107 = por %p105, %p106
      %p108 = scmp.ne.s32.totalorder %s96, %s97
      %p109 = scmp.eq.s32.totalorder %s26, 1
      %p110 = por %p108, %p109
      %p112 = scmp.ne.s32.totalorder %s97, %s111
      %p113 = scmp.eq.s32.totalorder %s26, 0
      %p114 = por %p112, %p113
      %s116 = sadd.s32 %s115, 1
      %p119 = scmp.eq.s32.totalorder %s20, 1
      %p120 = scmp.ne.s32.totalorder %s115, %s117
      %p121 = scmp.eq.s32.totalorder %s20, 0
      %p122 = por %p120, %p121
      %p123 = scmp.ne.s32.totalorder %s115, %s117
      %p124 = scmp.eq.s32.totalorder %s25, 1
      %p125 = por %p123, %p124
      %p126 = scmp.ne.s32.totalorder %s117, %s118
      %p127 = scmp.eq.s32.totalorder %s25, 0
      %p128 = por %p126, %p127
      %p129 = scmp.ne.s32.totalorder %s117, %s118
      %p130 = scmp.eq.s32.totalorder %s26, 1
      %p131 = por %p129, %p130
      %p133 = scmp.ne.s32.totalorder %s118, %s132
      %p134 = scmp.eq.s32.totalorder %s26, 0
      %p135 = por %p133, %p134
      %s136 = ssub.s32 %s28, %s35
      %s137 = ssub.s32 %s27, %s39
      %s138 = sor.u32 %s136, %s137
      %p139 = scmp.eq.s32.totalorder %s138, 0
      %s141 = sadd.s32 %s140, 1
      %s142 = scalar_select %p139, %s140, %s141
      %p145 = pneg %p139
      %p146 = scmp.eq.s32.totalorder %s20, 1
      %p147 = por %p145, %p146
      %p148 = scmp.ne.s32.totalorder %s140, %s143
      %p149 = scmp.eq.s32.totalorder %s20, 0
      %p150 = por %p148, %p149
      %p151 = scmp.ne.s32.totalorder %s140, %s143
      %p152 = scmp.eq.s32.totalorder %s25, 1
      %p153 = por %p151, %p152
      %p154 = scmp.ne.s32.totalorder %s143, %s144
      %p155 = scmp.eq.s32.totalorder %s25, 0
      %p156 = por %p154, %p155
      %p157 = scmp.ne.s32.totalorder %s143, %s144
      %p158 = scmp.eq.s32.totalorder %s26, 1
      %p159 = por %p157, %p158
      %p161 = scmp.ne.s32.totalorder %s144, %s160
      %p162 = scmp.eq.s32.totalorder %s26, 0
      %p163 = por %p161, %p162
      %s164 = ssub.s32 %s27, %s39
      %p165 = scmp.eq.s32.totalorder %s164, 0
      %s167 = sadd.s32 %s166, 1
      %s168 = scalar_select %p165, %s166, %s167
      %p171 = pneg %p165
      %p172 = scmp.eq.s32.totalorder %s20, 1
      %p173 = por %p171, %p172
      %p174 = scmp.ne.s32.totalorder %s166, %s169
      %p175 = scmp.eq.s32.totalorder %s20, 0
      %p176 = por %p174, %p175
      %p177 = scmp.ne.s32.totalorder %s166, %s169
      %p178 = scmp.eq.s32.totalorder %s25, 1
      %p179 = por %p177, %p178
      %p180 = scmp.ne.s32.totalorder %s169, %s170
      %p181 = scmp.eq.s32.totalorder %s25, 0
      %p182 = por %p180, %p181
      %p183 = scmp.ne.s32.totalorder %s169, %s170
      %p184 = scmp.eq.s32.totalorder %s26, 1
      %p185 = por %p183, %p184
      %p187 = scmp.ne.s32.totalorder %s170, %s186
      %p188 = scmp.eq.s32.totalorder %s26, 0
      %p189 = por %p187, %p188
      %p190 = scmp.le.s32.totalorder 1, %s20
      %p191 = scmp.lt.s32.totalorder %s20, 3
      %p192 = pnand %p190, %p191
      %p193 = pneg %p192
      // Predicated region
      $region9: #{tpu_custom_call.1} parent=5 // pred_check
        _
      $region10: #{tpu_custom_call.1} parent=5 // pred_check_branch
        %195 = sbr.rel (%p192) target = $region12
      $region11: #{tpu_custom_call.1} parent=5 // pred_region
        %s196 = ssub.s32 %s20, 1
        // Predicated region
        $region13: #{tpu_custom_call.1} parent=11 // pred_check
          %p197 = pneg %p86
        $region14: #{tpu_custom_call.1} parent=11 // pred_check_branch
          %199 = sbr.rel (%p197) target = $region16
        $region15: #{tpu_custom_call.1} parent=11 // pred_region
          %s201 = ssub.s32 128, 128
          %202 = vsyncadd [#allocation6], %s201
          %s203 = smul.addr %s29, 128
          %s204 = scalar_lea.hbm %s1, %s203
          %s206 = sshll.u32 [#allocation5], 4
          %s207 = int_to_ptr.vmem [resolvable:$true] %s206
          %209 = dma.hbm_to_vmem [thread:$0]  %s204, 128, %s207, [#allocation6]
        $region16: #{tpu_custom_call.1} parent=11 // pred_fallthru
          _
        // Predicated region
        $region17: #{tpu_custom_call.1} parent=11 // pred_check
          %p210 = pneg %p107
        $region18: #{tpu_custom_call.1} parent=11 // pred_check_branch
          %212 = sbr.rel (%p210) target = $region20
        $region19: #{tpu_custom_call.1} parent=11 // pred_region
          %s214 = ssub.s32 256, 256
          %215 = vsyncadd [#allocation6], %s214
          %s216 = sshll.u32 [#allocation7], 4
          %s217 = int_to_ptr.vmem [resolvable:$true] %s216
          %222 = dma.hbm_to_vmem [thread:$0]  %s2, 256, %s217, [#allocation6], 64, 64, 4
        $region20: #{tpu_custom_call.1} parent=11 // pred_fallthru
          _
        // Predicated region
        $region21: #{tpu_custom_call.1} parent=11 // pred_check
          %p223 = pneg %p128
        $region22: #{tpu_custom_call.1} parent=11 // pred_check_branch
          %225 = sbr.rel (%p223) target = $region24
        $region23: #{tpu_custom_call.1} parent=11 // pred_region
          _
        $region24: #{tpu_custom_call.1} parent=11 // pred_fallthru
          _
      $region12: #{tpu_custom_call.1} parent=5 // pred_fallthru
        _
      %p226 = scmp.lt.s32.totalorder %s20, 2
      // Predicated region
      $region25: #{tpu_custom_call.1} parent=5 // pred_check
        %p227 = pneg %p226
      $region26: #{tpu_custom_call.1} parent=5 // pred_check_branch
        %229 = sbr.rel (%p227) target = $region28
      $region27: #{tpu_custom_call.1} parent=5 // pred_region
        // Predicated region
        $region29: #{tpu_custom_call.1} parent=27 // pred_check
          %p230 = pneg %p54
        $region30: #{tpu_custom_call.1} parent=27 // pred_check_branch
          %232 = sbr.rel (%p230) target = $region32
        $region31: #{tpu_custom_call.1} parent=27 // pred_region
          %s233 = sand.u32 %s44, 1
          %s234 = scalar_lea.sflag [#allocation3], %s233
          %s235 = sand.u32 %s44, 1
          %s236 = smul.addr %s235, 32
          %s237 = scalar_lea.vmem [#allocation2], %s236
          %s238 = smul.u32 8, %s28
          %s240 = ssub.s32 512, 512
          %241 = vsyncadd %s234, %s240
          %s242 = sadd.s32 %s27, %s238
          %s243 = smul.addr %s242, 64
          %s244 = scalar_lea.hbm %s0, %s243
          %s245 = sshll.u32 %s237, 4
          %s246 = int_to_ptr.vmem [resolvable:$true] %s245
          %251 = dma.hbm_to_vmem [thread:$0]  %s244, 512, %s246, %s234, 64, 64, 4
        $region32: #{tpu_custom_call.1} parent=27 // pred_fallthru
          _
      $region28: #{tpu_custom_call.1} parent=5 // pred_fallthru
        _
      %p252 = scmp.le.s32.totalorder 1, %s20
      %p253 = scmp.lt.s32.totalorder %s20, 3
      %p254 = pnand %p252, %p253
      %p255 = pneg %p254
      // Predicated region
      $region33: #{tpu_custom_call.1} parent=5 // pred_check
        _
      $region34: #{tpu_custom_call.1} parent=5 // pred_check_branch
        %257 = sbr.rel (%p254) target = $region36
      $region35: #{tpu_custom_call.1} parent=5 // pred_region
        %s258 = ssub.s32 %s20, 1
        %s259 = sand.u32 %s47, 1
        %s260 = scalar_lea.sflag [#allocation3], %s259
        %s261 = sand.u32 %s47, 1
        %s262 = smul.addr %s261, 32
        %s263 = scalar_lea.vmem [#allocation2], %s262
        // Predicated region
        $region37: #{tpu_custom_call.1} parent=35 // pred_check
          %p264 = pneg %p60
        $region38: #{tpu_custom_call.1} parent=35 // pred_check_branch
          %266 = sbr.rel (%p264) target = $region40
        $region39: #{tpu_custom_call.1} parent=35 // pred_region
          %267 = dma.done %s260, 512
        $region40: #{tpu_custom_call.1} parent=35 // pred_fallthru
          _
        // Predicated region
        $region41: #{tpu_custom_call.1} parent=35 // pred_check
          %p268 = pneg %p86
        $region42: #{tpu_custom_call.1} parent=35 // pred_check_branch
          %270 = sbr.rel (%p268) target = $region44
        $region43: #{tpu_custom_call.1} parent=35 // pred_region
          %271 = dma.done [#allocation6], 128
        $region44: #{tpu_custom_call.1} parent=35 // pred_fallthru
          _
        // Predicated region
        $region45: #{tpu_custom_call.1} parent=35 // pred_check
          %p272 = pneg %p107
        $region46: #{tpu_custom_call.1} parent=35 // pred_check_branch
          %274 = sbr.rel (%p272) target = $region48
        $region47: #{tpu_custom_call.1} parent=35 // pred_region
          %275 = dma.done [#allocation6], 256
        $region48: #{tpu_custom_call.1} parent=35 // pred_fallthru
          _
        %s276 = sand.u32 %s47, 1
        %s277 = scalar_lea.sflag [#allocation3], %s276
        %s278 = sand.u32 %s47, 1
        %s279 = smul.addr %s278, 32
        %s280 = scalar_lea.vmem [#allocation2], %s279
        %p281 = pneg %p60
        %p282 = pneg %p57
        %p283 = pneg %p86
        %p284 = pneg %p83
        %p285 = pneg %p107
        %p286 = pneg %p104
        %p287 = pneg %p128
        %p288 = pneg %p125
        %p289 = pneg %p156
        %p290 = pneg %p153
        %s291 = sand.u32 %s143, 1
        %s292 = scalar_lea.sflag [#allocation4], %s291
        %s293 = sand.u32 %s143, 1
        %s294 = smul.addr %s293, 32
        %s295 = scalar_lea.vmem [#allocation8], %s294
        %p296 = pneg %p182
        %p297 = pneg %p179
        %s298 = smul.u32 8, %s30
        %s299 = smul.u32 8, %s30
        %p301 = scmp.eq.s32.totalorder %s30, 0
        // Predicated region
        $region49: #{tpu_custom_call.1} parent=35 // pred_check
          %p302 = pneg %p301
        $region50: #{tpu_custom_call.1} parent=35 // pred_check_branch
          %304 = sbr.rel (%p302) target = $region52
        $region51: #{tpu_custom_call.1} parent=35 // pred_region
          %v305 = vld [vmem:[#allocation5] sm:$0xff]
          %vm306 = vcmask 261120
          %307 = vst.msk [vmem:[#allocation9] sm:$0xff] %vm306, %v305
        $region52: #{tpu_custom_call.1} parent=35 // pred_fallthru
          _
        %v308 = vld [vmem:[#allocation7] sm:$0xf]
        %v309 = vld [vmem:[#allocation7 + $0x4] sm:$0xf]
        %v310 = vld [vmem:[#allocation7 + $0x8] sm:$0xf]
        %v311 = vld [vmem:[#allocation7 + $0xc] sm:$0xf]
        %v312 = vld [vmem:[%s3] sm:$0x1]
        %v314 = vlaneseq
        %v315 = vshrl.u32 %v314, 7
        %v316 = vsub.s32 0, %v315
        %v317 = vrot.slane %v312, %v316
        %v319 = vld [vmem:[#allocation9] sm:$0xff]
        %v320 = vpack.c.bf16 %v319, %v319
        %v325 = vunpack.c.l.b16 %v308
        %v326 = vunpack.c.l.b16 %v309
        %v327 = vunpack.c.l.b16 %v310
        %v328 = vunpack.c.l.b16 %v311
        %v329 = vpack.c.b16 %v326, %v325
        %v330 = vpack.c.b16 %v328, %v327
        %vm333 = vcmask 261120
        %v335 = vsel %vm333, %v320, 0
        %337 = vmatprep.subr.bf16.mxu0 0
        %338 = vmatpush1.bf16.msra.mxu0 %v329
        %339 = vmatprep.subr.bf16.mxu0 0
        %340 = vmatpush1.bf16.msra.mxu0 %v330
        %341 = vmatprep.subr.bf16.mxu0 0
        %342 = vmatpush1.bf16.msra.mxu0 0
        %343 = vmatprep.subr.bf16.mxu0 0
        %344 = vmatpush1.bf16.msra.mxu0 0
        %345 = vmatprep.subr.bf16.mxu0 0
        %346 = vmatpush1.bf16.msra.mxu0 0
        %347 = vmatprep.subr.bf16.mxu0 0
        %348 = vmatpush1.bf16.msra.mxu0 0
        %349 = vmatprep.subr.bf16.mxu0 0
        %350 = vmatpush1.bf16.msra.mxu0 0
        %351 = vmatprep.subr.bf16.mxu0 0
        %352 = vmatpush1.bf16.msra.mxu0 0
        %353 = vmatprep.subr.bf16.mxu0 0
        %354 = vmatpush1.bf16.msra.mxu0 0
        %355 = vmatprep.subr.bf16.mxu0 0
        %356 = vmatpush1.bf16.msra.mxu0 0
        %357 = vmatprep.subr.bf16.mxu0 0
        %358 = vmatpush1.bf16.msra.mxu0 0
        %359 = vmatprep.subr.bf16.mxu0 0
        %360 = vmatpush1.bf16.msra.mxu0 0
        %361 = vmatprep.subr.bf16.mxu0 0
        %362 = vmatpush1.bf16.msra.mxu0 0
        %363 = vmatprep.subr.bf16.mxu0 0
        %364 = vmatpush1.bf16.msra.mxu0 0
        %365 = vmatprep.subr.bf16.mxu0 0
        %366 = vmatpush1.bf16.msra.mxu0 0
        %367 = vmatprep.subr.bf16.mxu0 0
        %368 = vmatpush1.bf16.msra.mxu0 0
        %369 = vmatprep.mubr.bf16.mxu0 0
        %370 = vmatmul.mubr.bf16.gmra.mrb[0].mxu0 %v335
        %v371 = vpop.f32.mrb[0].mxu0
        %v372 = vadd.f32 0.0, %v371
        %v373 = vpop.f32.mrb[0].mxu0
        %v374 = vpop.f32.mrb[0].mxu0
        %v375 = vpop.f32.mrb[0].mxu0
        %376 = vdwg.mxu0
        %v377 = vld [vmem:[%s263] sm:$0xf]
        %v378 = vunpack.c.l.bf16 %v377
        %v379 = vadd.f32 %v378, %v372
        %v380 = vadd.f32 %v379, %v317
        %v381 = vtanh.pop %v380
        %v382 = vpack.c.bf16 %v381, %v381
        %vm383 = vcmask 257024
        %384 = vst.msk [vmem:[%s295] sm:$0xf] %vm383, %v382
        %v386 = vsel %vm333, %v382, 0
        %388 = vmatprep.subr.bf16.mxu0 0
        %389 = vmatpush1.bf16.msra.mxu0 %v329
        %390 = vmatprep.subr.bf16.mxu0 0
        %391 = vmatpush1.bf16.msra.mxu0 %v330
        %392 = vmatprep.subr.bf16.mxu0 0
        %393 = vmatpush1.bf16.msra.mxu0 0
        %394 = vmatprep.subr.bf16.mxu0 0
        %395 = vmatpush1.bf16.msra.mxu0 0
        %396 = vmatprep.subr.bf16.mxu0 0
        %397 = vmatpush1.bf16.msra.mxu0 0
        %398 = vmatprep.subr.bf16.mxu0 0
        %399 = vmatpush1.bf16.msra.mxu0 0
        %400 = vmatprep.subr.bf16.mxu0 0
        %401 = vmatpush1.bf16.msra.mxu0 0
        %402 = vmatprep.subr.bf16.mxu0 0
        %403 = vmatpush1.bf16.msra.mxu0 0
        %404 = vmatprep.subr.bf16.mxu0 0
        %405 = vmatpush1.bf16.msra.mxu0 0
        %406 = vmatprep.subr.bf16.mxu0 0
        %407 = vmatpush1.bf16.msra.mxu0 0
        %408 = vmatprep.subr.bf16.mxu0 0
        %409 = vmatpush1.bf16.msra.mxu0 0
        %410 = vmatprep.subr.bf16.mxu0 0
        %411 = vmatpush1.bf16.msra.mxu0 0
        %412 = vmatprep.subr.bf16.mxu0 0
        %413 = vmatpush1.bf16.msra.mxu0 0
        %414 = vmatprep.subr.bf16.mxu0 0
        %415 = vmatpush1.bf16.msra.mxu0 0
        %416 = vmatprep.subr.bf16.mxu0 0
        %417 = vmatpush1.bf16.msra.mxu0 0
        %418 = vmatprep.subr.bf16.mxu0 0
        %419 = vmatpush1.bf16.msra.mxu0 0
        %420 = vmatprep.mubr.bf16.mxu0 0
        %421 = vmatmul.mubr.bf16.gmra.mrb[0].mxu0 %v386
        %v422 = vpop.f32.mrb[0].mxu0
        %v423 = vadd.f32 0.0, %v422
        %v424 = vpop.f32.mrb[0].mxu0
        %v425 = vpop.f32.mrb[0].mxu0
        %v426 = vpop.f32.mrb[0].mxu0
        %427 = vdwg.mxu0
        %s428 = scalar_lea.vmem %s263, 4 [#allocation2]
        %v429 = vld [vmem:[%s428] sm:$0xf]
        %v430 = vunpack.c.l.bf16 %v429
        %v431 = vadd.f32 %v430, %v423
        %v432 = vadd.f32 %v431, %v317
        %v433 = vtanh.pop %v432
        %v434 = vpack.c.bf16 %v433, %v433
        %s435 = scalar_lea.vmem %s295, 4 [#allocation8]
        %436 = vst.msk [vmem:[%s435] sm:$0xf] %vm383, %v434
        %v438 = vsel %vm333, %v434, 0
        %440 = vmatprep.subr.bf16.mxu0 0
        %441 = vmatpush1.bf16.msra.mxu0 %v329
        %442 = vmatprep.subr.bf16.mxu0 0
        %443 = vmatpush1.bf16.msra.mxu0 %v330
        %444 = vmatprep.subr.bf16.mxu0 0
        %445 = vmatpush1.bf16.msra.mxu0 0
        %446 = vmatprep.subr.bf16.mxu0 0
        %447 = vmatpush1.bf16.msra.mxu0 0
        %448 = vmatprep.subr.bf16.mxu0 0
        %449 = vmatpush1.bf16.msra.mxu0 0
        %450 = vmatprep.subr.bf16.mxu0 0
        %451 = vmatpush1.bf16.msra.mxu0 0
        %452 = vmatprep.subr.bf16.mxu0 0
        %453 = vmatpush1.bf16.msra.mxu0 0
        %454 = vmatprep.subr.bf16.mxu0 0
        %455 = vmatpush1.bf16.msra.mxu0 0
        %456 = vmatprep.subr.bf16.mxu0 0
        %457 = vmatpush1.bf16.msra.mxu0 0
        %458 = vmatprep.subr.bf16.mxu0 0
        %459 = vmatpush1.bf16.msra.mxu0 0
        %460 = vmatprep.subr.bf16.mxu0 0
        %461 = vmatpush1.bf16.msra.mxu0 0
        %462 = vmatprep.subr.bf16.mxu0 0
        %463 = vmatpush1.bf16.msra.mxu0 0
        %464 = vmatprep.subr.bf16.mxu0 0
        %465 = vmatpush1.bf16.msra.mxu0 0
        %466 = vmatprep.subr.bf16.mxu0 0
        %467 = vmatpush1.bf16.msra.mxu0 0
        %468 = vmatprep.subr.bf16.mxu0 0
        %469 = vmatpush1.bf16.msra.mxu0 0
        %470 = vmatprep.subr.bf16.mxu0 0
        %471 = vmatpush1.bf16.msra.mxu0 0
        %472 = vmatprep.mubr.bf16.mxu0 0
        %473 = vmatmul.mubr.bf16.gmra.mrb[0].mxu0 %v438
        %v474 = vpop.f32.mrb[0].mxu0
        %v475 = vadd.f32 0.0, %v474
        %v476 = vpop.f32.mrb[0].mxu0
        %v477 = vpop.f32.mrb[0].mxu0
        %v478 = vpop.f32.mrb[0].mxu0
        %479 = vdwg.mxu0
        %s480 = scalar_lea.vmem %s263, 8 [#allocation2]
        %v481 = vld [vmem:[%s480] sm:$0xf]
        %v482 = vunpack.c.l.bf16 %v481
        %v483 = vadd.f32 %v482, %v475
        %v484 = vadd.f32 %v483, %v317
        %v485 = vtanh.pop %v484
        %v486 = vpack.c.bf16 %v485, %v485
        %s487 = scalar_lea.vmem %s295, 8 [#allocation8]
        %488 = vst.msk [vmem:[%s487] sm:$0xf] %vm383, %v486
        %v490 = vsel %vm333, %v486, 0
        %492 = vmatprep.subr.bf16.mxu0 0
        %493 = vmatpush1.bf16.msra.mxu0 %v329
        %494 = vmatprep.subr.bf16.mxu0 0
        %495 = vmatpush1.bf16.msra.mxu0 %v330
        %496 = vmatprep.subr.bf16.mxu0 0
        %497 = vmatpush1.bf16.msra.mxu0 0
        %498 = vmatprep.subr.bf16.mxu0 0
        %499 = vmatpush1.bf16.msra.mxu0 0
        %500 = vmatprep.subr.bf16.mxu0 0
        %501 = vmatpush1.bf16.msra.mxu0 0
        %502 = vmatprep.subr.bf16.mxu0 0
        %503 = vmatpush1.bf16.msra.mxu0 0
        %504 = vmatprep.subr.bf16.mxu0 0
        %505 = vmatpush1.bf16.msra.mxu0 0
        %506 = vmatprep.subr.bf16.mxu0 0
        %507 = vmatpush1.bf16.msra.mxu0 0
        %508 = vmatprep.subr.bf16.mxu0 0
        %509 = vmatpush1.bf16.msra.mxu0 0
        %510 = vmatprep.subr.bf16.mxu0 0
        %511 = vmatpush1.bf16.msra.mxu0 0
        %512 = vmatprep.subr.bf16.mxu0 0
        %513 = vmatpush1.bf16.msra.mxu0 0
        %514 = vmatprep.subr.bf16.mxu0 0
        %515 = vmatpush1.bf16.msra.mxu0 0
        %516 = vmatprep.subr.bf16.mxu0 0
        %517 = vmatpush1.bf16.msra.mxu0 0
        %518 = vmatprep.subr.bf16.mxu0 0
        %519 = vmatpush1.bf16.msra.mxu0 0
        %520 = vmatprep.subr.bf16.mxu0 0
        %521 = vmatpush1.bf16.msra.mxu0 0
        %522 = vmatprep.subr.bf16.mxu0 0
        %523 = vmatpush1.bf16.msra.mxu0 0
        %524 = vmatprep.mubr.bf16.mxu0 0
        %525 = vmatmul.mubr.bf16.gmra.mrb[0].mxu0 %v490
        %v526 = vpop.f32.mrb[0].mxu0
        %v527 = vadd.f32 0.0, %v526
        %v528 = vpop.f32.mrb[0].mxu0
        %v529 = vpop.f32.mrb[0].mxu0
        %v530 = vpop.f32.mrb[0].mxu0
        %531 = vdwg.mxu0
        %s532 = scalar_lea.vmem %s263, 12 [#allocation2]
        %v533 = vld [vmem:[%s532] sm:$0xf]
        %v534 = vunpack.c.l.bf16 %v533
        %v535 = vadd.f32 %v534, %v527
        %v536 = vadd.f32 %v535, %v317
        %v537 = vtanh.pop %v536
        %v538 = vpack.c.bf16 %v537, %v537
        %s539 = scalar_lea.vmem %s295, 12 [#allocation8]
        %540 = vst.msk [vmem:[%s539] sm:$0xf] %vm383, %v538
        %v542 = vsel %vm333, %v538, 0
        %544 = vmatprep.subr.bf16.mxu0 0
        %545 = vmatpush1.bf16.msra.mxu0 %v329
        %546 = vmatprep.subr.bf16.mxu0 0
        %547 = vmatpush1.bf16.msra.mxu0 %v330
        %548 = vmatprep.subr.bf16.mxu0 0
        %549 = vmatpush1.bf16.msra.mxu0 0
        %550 = vmatprep.subr.bf16.mxu0 0
        %551 = vmatpush1.bf16.msra.mxu0 0
        %552 = vmatprep.subr.bf16.mxu0 0
        %553 = vmatpush1.bf16.msra.mxu0 0
        %554 = vmatprep.subr.bf16.mxu0 0
        %555 = vmatpush1.bf16.msra.mxu0 0
        %556 = vmatprep.subr.bf16.mxu0 0
        %557 = vmatpush1.bf16.msra.mxu0 0
        %558 = vmatprep.subr.bf16.mxu0 0
        %559 = vmatpush1.bf16.msra.mxu0 0
        %560 = vmatprep.subr.bf16.mxu0 0
        %561 = vmatpush1.bf16.msra.mxu0 0
        %562 = vmatprep.subr.bf16.mxu0 0
        %563 = vmatpush1.bf16.msra.mxu0 0
        %564 = vmatprep.subr.bf16.mxu0 0
        %565 = vmatpush1.bf16.msra.mxu0 0
        %566 = vmatprep.subr.bf16.mxu0 0
        %567 = vmatpush1.bf16.msra.mxu0 0
        %568 = vmatprep.subr.bf16.mxu0 0
        %569 = vmatpush1.bf16.msra.mxu0 0
        %570 = vmatprep.subr.bf16.mxu0 0
        %571 = vmatpush1.bf16.msra.mxu0 0
        %572 = vmatprep.subr.bf16.mxu0 0
        %573 = vmatpush1.bf16.msra.mxu0 0
        %574 = vmatprep.subr.bf16.mxu0 0
        %575 = vmatpush1.bf16.msra.mxu0 0
        %576 = vmatprep.mubr.bf16.mxu0 0
        %577 = vmatmul.mubr.bf16.gmra.mrb[0].mxu0 %v542
        %v578 = vpop.f32.mrb[0].mxu0
        %v579 = vadd.f32 0.0, %v578
        %v580 = vpop.f32.mrb[0].mxu0
        %v581 = vpop.f32.mrb[0].mxu0
        %v582 = vpop.f32.mrb[0].mxu0
        %583 = vdwg.mxu0
        %s584 = scalar_lea.vmem %s263, 16 [#allocation2]
        %v585 = vld [vmem:[%s584] sm:$0xf]
        %v586 = vunpack.c.l.bf16 %v585
        %v587 = vadd.f32 %v586, %v579
        %v588 = vadd.f32 %v587, %v317
        %v589 = vtanh.pop %v588
        %v590 = vpack.c.bf16 %v589, %v589
        %s591 = scalar_lea.vmem %s295, 16 [#allocation8]
        %592 = vst.msk [vmem:[%s591] sm:$0xf] %vm383, %v590
        %v594 = vsel %vm333, %v590, 0
        %596 = vmatprep.subr.bf16.mxu0 0
        %597 = vmatpush1.bf16.msra.mxu0 %v329
        %598 = vmatprep.subr.bf16.mxu0 0
        %599 = vmatpush1.bf16.msra.mxu0 %v330
        %600 = vmatprep.subr.bf16.mxu0 0
        %601 = vmatpush1.bf16.msra.mxu0 0
        %602 = vmatprep.subr.bf16.mxu0 0
        %603 = vmatpush1.bf16.msra.mxu0 0
        %604 = vmatprep.subr.bf16.mxu0 0
        %605 = vmatpush1.bf16.msra.mxu0 0
        %606 = vmatprep.subr.bf16.mxu0 0
        %607 = vmatpush1.bf16.msra.mxu0 0
        %608 = vmatprep.subr.bf16.mxu0 0
        %609 = vmatpush1.bf16.msra.mxu0 0
        %610 = vmatprep.subr.bf16.mxu0 0
        %611 = vmatpush1.bf16.msra.mxu0 0
        %612 = vmatprep.subr.bf16.mxu0 0
        %613 = vmatpush1.bf16.msra.mxu0 0
        %614 = vmatprep.subr.bf16.mxu0 0
        %615 = vmatpush1.bf16.msra.mxu0 0
        %616 = vmatprep.subr.bf16.mxu0 0
        %617 = vmatpush1.bf16.msra.mxu0 0
        %618 = vmatprep.subr.bf16.mxu0 0
        %619 = vmatpush1.bf16.msra.mxu0 0
        %620 = vmatprep.subr.bf16.mxu0 0
        %621 = vmatpush1.bf16.msra.mxu0 0
        %622 = vmatprep.subr.bf16.mxu0 0
        %623 = vmatpush1.bf16.msra.mxu0 0
        %624 = vmatprep.subr.bf16.mxu0 0
        %625 = vmatpush1.bf16.msra.mxu0 0
        %626 = vmatprep.subr.bf16.mxu0 0
        %627 = vmatpush1.bf16.msra.mxu0 0
        %628 = vmatprep.mubr.bf16.mxu0 0
        %629 = vmatmul.mubr.bf16.gmra.mrb[0].mxu0 %v594
        %v630 = vpop.f32.mrb[0].mxu0
        %v631 = vadd.f32 0.0, %v630
        %v632 = vpop.f32.mrb[0].mxu0
        %v633 = vpop.f32.mrb[0].mxu0
        %v634 = vpop.f32.mrb[0].mxu0
        %635 = vdwg.mxu0
        %s636 = scalar_lea.vmem %s263, 20 [#allocation2]
        %v637 = vld [vmem:[%s636] sm:$0xf]
        %v638 = vunpack.c.l.bf16 %v637
        %v639 = vadd.f32 %v638, %v631
        %v640 = vadd.f32 %v639, %v317
        %v641 = vtanh.pop %v640
        %v642 = vpack.c.bf16 %v641, %v641
        %s643 = scalar_lea.vmem %s295, 20 [#allocation8]
        %644 = vst.msk [vmem:[%s643] sm:$0xf] %vm383, %v642
        %v646 = vsel %vm333, %v642, 0
        %648 = vmatprep.subr.bf16.mxu0 0
        %649 = vmatpush1.bf16.msra.mxu0 %v329
        %650 = vmatprep.subr.bf16.mxu0 0
        %651 = vmatpush1.bf16.msra.mxu0 %v330
        %652 = vmatprep.subr.bf16.mxu0 0
        %653 = vmatpush1.bf16.msra.mxu0 0
        %654 = vmatprep.subr.bf16.mxu0 0
        %655 = vmatpush1.bf16.msra.mxu0 0
        %656 = vmatprep.subr.bf16.mxu0 0
        %657 = vmatpush1.bf16.msra.mxu0 0
        %658 = vmatprep.subr.bf16.mxu0 0
        %659 = vmatpush1.bf16.msra.mxu0 0
        %660 = vmatprep.subr.bf16.mxu0 0
        %661 = vmatpush1.bf16.msra.mxu0 0
        %662 = vmatprep.subr.bf16.mxu0 0
        %663 = vmatpush1.bf16.msra.mxu0 0
        %664 = vmatprep.subr.bf16.mxu0 0
        %665 = vmatpush1.bf16.msra.mxu0 0
        %666 = vmatprep.subr.bf16.mxu0 0
        %667 = vmatpush1.bf16.msra.mxu0 0
        %668 = vmatprep.subr.bf16.mxu0 0
        %669 = vmatpush1.bf16.msra.mxu0 0
        %670 = vmatprep.subr.bf16.mxu0 0
        %671 = vmatpush1.bf16.msra.mxu0 0
        %672 = vmatprep.subr.bf16.mxu0 0
        %673 = vmatpush1.bf16.msra.mxu0 0
        %674 = vmatprep.subr.bf16.mxu0 0
        %675 = vmatpush1.bf16.msra.mxu0 0
        %676 = vmatprep.subr.bf16.mxu0 0
        %677 = vmatpush1.bf16.msra.mxu0 0
        %678 = vmatprep.subr.bf16.mxu0 0
        %679 = vmatpush1.bf16.msra.mxu0 0
        %680 = vmatprep.mubr.bf16.mxu0 0
        %681 = vmatmul.mubr.bf16.gmra.mrb[0].mxu0 %v646
        %v682 = vpop.f32.mrb[0].mxu0
        %v683 = vadd.f32 0.0, %v682
        %v684 = vpop.f32.mrb[0].mxu0
        %v685 = vpop.f32.mrb[0].mxu0
        %v686 = vpop.f32.mrb[0].mxu0
        %687 = vdwg.mxu0
        %s688 = scalar_lea.vmem %s263, 24 [#allocation2]
        %v689 = vld [vmem:[%s688] sm:$0xf]
        %v690 = vunpack.c.l.bf16 %v689
        %v691 = vadd.f32 %v690, %v683
        %v692 = vadd.f32 %v691, %v317
        %v693 = vtanh.pop %v692
        %v694 = vpack.c.bf16 %v693, %v693
        %s695 = scalar_lea.vmem %s295, 24 [#allocation8]
        %696 = vst.msk [vmem:[%s695] sm:$0xf] %vm383, %v694
        %v698 = vsel %vm333, %v694, 0
        %700 = vmatprep.subr.bf16.mxu0 0
        %701 = vmatpush1.bf16.msra.mxu0 %v329
        %702 = vmatprep.subr.bf16.mxu0 0
        %703 = vmatpush1.bf16.msra.mxu0 %v330
        %704 = vmatprep.subr.bf16.mxu0 0
        %705 = vmatpush1.bf16.msra.mxu0 0
        %706 = vmatprep.subr.bf16.mxu0 0
        %707 = vmatpush1.bf16.msra.mxu0 0
        %708 = vmatprep.subr.bf16.mxu0 0
        %709 = vmatpush1.bf16.msra.mxu0 0
        %710 = vmatprep.subr.bf16.mxu0 0
        %711 = vmatpush1.bf16.msra.mxu0 0
        %712 = vmatprep.subr.bf16.mxu0 0
        %713 = vmatpush1.bf16.msra.mxu0 0
        %714 = vmatprep.subr.bf16.mxu0 0
        %715 = vmatpush1.bf16.msra.mxu0 0
        %716 = vmatprep.subr.bf16.mxu0 0
        %717 = vmatpush1.bf16.msra.mxu0 0
        %718 = vmatprep.subr.bf16.mxu0 0
        %719 = vmatpush1.bf16.msra.mxu0 0
        %720 = vmatprep.subr.bf16.mxu0 0
        %721 = vmatpush1.bf16.msra.mxu0 0
        %722 = vmatprep.subr.bf16.mxu0 0
        %723 = vmatpush1.bf16.msra.mxu0 0
        %724 = vmatprep.subr.bf16.mxu0 0
        %725 = vmatpush1.bf16.msra.mxu0 0
        %726 = vmatprep.subr.bf16.mxu0 0
        %727 = vmatpush1.bf16.msra.mxu0 0
        %728 = vmatprep.subr.bf16.mxu0 0
        %729 = vmatpush1.bf16.msra.mxu0 0
        %730 = vmatprep.subr.bf16.mxu0 0
        %731 = vmatpush1.bf16.msra.mxu0 0
        %732 = vmatprep.mubr.bf16.mxu0 0
        %733 = vmatmul.mubr.bf16.gmra.mrb[0].mxu0 %v698
        %v734 = vpop.f32.mrb[0].mxu0
        %v735 = vadd.f32 0.0, %v734
        %v736 = vpop.f32.mrb[0].mxu0
        %v737 = vpop.f32.mrb[0].mxu0
        %v738 = vpop.f32.mrb[0].mxu0
        %739 = vdwg.mxu0
        %s740 = scalar_lea.vmem %s263, 28 [#allocation2]
        %v741 = vld [vmem:[%s740] sm:$0xf]
        %v742 = vunpack.c.l.bf16 %v741
        %v743 = vadd.f32 %v742, %v735
        %v744 = vadd.f32 %v743, %v317
        %v745 = vtanh.pop %v744
        %v746 = vpack.c.bf16 %v745, %v745
        %s747 = scalar_lea.vmem %s295, 28 [#allocation8]
        %748 = vst.msk [vmem:[%s747] sm:$0xf] %vm383, %v746
        %749 = vst.msk [vmem:[#allocation9] sm:$0xff] %vm333, %v745
        %s750 = sand.u32 %s143, 1
        %s751 = scalar_lea.sflag [#allocation4], %s750
        %s752 = sand.u32 %s143, 1
        %s753 = smul.addr %s752, 32
        %s754 = scalar_lea.vmem [#allocation8], %s753
        // Predicated region
        $region53: #{tpu_custom_call.1} parent=35 // pred_check
          %p755 = pneg %p153
        $region54: #{tpu_custom_call.1} parent=35 // pred_check_branch
          %757 = sbr.rel (%p755) target = $region56
        $region55: #{tpu_custom_call.1} parent=35 // pred_region
          %s758 = smul.u32 8, %s30
          %s760 = ssub.s32 512, 512
          %761 = vsyncadd %s751, %s760
          %s762 = sadd.s32 %s29, %s758
          %s763 = smul.addr %s762, 64
          %s764 = scalar_lea.hbm %s4, %s763
          %s765 = sshll.u32 %s754, 4
          %s766 = int_to_ptr.vmem [resolvable:$true] %s765
          %771 = dma.vmem_to_hbm [thread:$0]  %s766, 512, %s764, %s751, 64, 64, 4
        $region56: #{tpu_custom_call.1} parent=35 // pred_fallthru
          _
        // Predicated region
        $region57: #{tpu_custom_call.1} parent=35 // pred_check
          %p772 = pneg %p179
        $region58: #{tpu_custom_call.1} parent=35 // pred_check_branch
          %774 = sbr.rel (%p772) target = $region60
        $region59: #{tpu_custom_call.1} parent=35 // pred_region
          %s776 = ssub.s32 128, 128
          %777 = vsyncadd [#allocation10], %s776
          %s778 = smul.addr %s29, 128
          %s779 = scalar_lea.hbm %s5, %s778
          %s781 = sshll.u32 [#allocation9], 4
          %s782 = int_to_ptr.vmem [resolvable:$true] %s781
          %784 = dma.vmem_to_hbm [thread:$0]  %s782, 128, %s779, [#allocation10]
        $region60: #{tpu_custom_call.1} parent=35 // pred_fallthru
          _
        // Predicated region
        $region61: #{tpu_custom_call.1} parent=35 // pred_check
          %p785 = pneg %p179
        $region62: #{tpu_custom_call.1} parent=35 // pred_check_branch
          %787 = sbr.rel (%p785) target = $region64
        $region63: #{tpu_custom_call.1} parent=35 // pred_region
          %788 = dma.done [#allocation10], 128
        $region64: #{tpu_custom_call.1} parent=35 // pred_fallthru
          _
      $region36: #{tpu_custom_call.1} parent=5 // pred_fallthru
        _
      %p789 = scmp.le.s32.totalorder 2, %s20
      // Predicated region
      $region65: #{tpu_custom_call.1} parent=5 // pred_check
        %p790 = pneg %p789
      $region66: #{tpu_custom_call.1} parent=5 // pred_check_branch
        %792 = sbr.rel (%p790) target = $region68
      $region67: #{tpu_custom_call.1} parent=5 // pred_region
        %s793 = ssub.s32 %s20, 2
        // Predicated region
        $region69: #{tpu_custom_call.1} parent=67 // pred_check
          %p794 = pneg %p159
        $region70: #{tpu_custom_call.1} parent=67 // pred_check_branch
          %796 = sbr.rel (%p794) target = $region72
        $region71: #{tpu_custom_call.1} parent=67 // pred_region
          %s797 = sand.u32 %s144, 1
          %s798 = scalar_lea.sflag [#allocation4], %s797
          %s799 = sand.u32 %s144, 1
          %s800 = smul.addr %s799, 32
          %s801 = scalar_lea.vmem [#allocation8], %s800
          %802 = dma.done %s798, 512
        $region72: #{tpu_custom_call.1} parent=67 // pred_fallthru
          _
      $region68: #{tpu_custom_call.1} parent=5 // pred_fallthru
        _
    $region6: #{tpu_custom_call.1} parent=1 // loop_footer
      %s24 = sadd.s32 1, %s20
    $region7: #{tpu_custom_call.1} parent=1 // loop_footer_branch
      %19 = sbr.rel target = $region3
    $region8: #{tpu_custom_call.1} parent=1 // loop_exit
      _
    %803 = vsyncpa [#allocation3], 1
    %s804 = scalar_lea.sflag [#allocation3], 1
    %805 = vsyncpa %s804, 1
    %806 = vsyncpa [#allocation6], 1
    %807 = vsyncpa [#allocation4], 1
    %s808 = scalar_lea.sflag [#allocation4], 1
    %809 = vsyncpa %s808, 1
    %810 = vsyncpa [#allocation10], 1

</llo_original>
